<compile_context>
chip_gen: v5e
topology: v5e:2x2
jax: 0.10.0
libtpu: 0.0.40
codegen_flags: <defaults>
</compile_context>

<pallas_src>
import jax
import jax.numpy as jnp
from jax.experimental import pallas as pl
from jax.experimental.pallas import tpu as pltpu

_LANE = 128
_SUBLANE = 8
_TARGET_A_BUFFER_BYTES = 16 * 1024 * 1024   # per A pipeline buffer
_SMALL_N_LANES = 4096                        # single-K-block threshold (lanes)
_ROW_CHUNK_BYTES = 1 << 20                   # in-kernel f32 working set bound


def _cdiv(a, b):
    return -(-a // b)


def _round_up(a, b):
    return _cdiv(a, b) * b


def _round_down(a, b):
    return (a // b) * b


def _vmem_budget_bytes():
    """~75% of physical VMEM (~96 MiB v5e/v6e, ~48 MiB v7x); safe fallback."""
    try:
        cap = pltpu.get_tpu_info().vmem_capacity_bytes
    except Exception:
        cap = 64 * 1024 * 1024               # assume the smallest (v7x) VMEM
    return int(cap) * 3 // 4


def _choose_tiles(M, N, itemsize, budget):
    """Pick (tm, tk, k_tiles, rm).

    tm: A row-tile height, tk: K tile width, k_tiles: number of K grid steps,
    rm: row-chunk size used inside the single-K-block kernel to bound the
    size of in-kernel f32 temporaries.
    """
    lane_n = _round_up(N, _LANE)

    if lane_n <= _SMALL_N_LANES:
        # Whole rows fit comfortably in one block: single K step, no masking.
        tk, k_tiles = N, 1
        row_bytes = lane_n * itemsize
    else:
        # Tile the reduction in lane-aligned chunks; ragged last tile is
        # masked inside the kernel (A is never padded in HBM).
        tk = 8192 if itemsize <= 2 else 4096
        k_tiles = _cdiv(N, tk)
        row_bytes = tk * itemsize

    # Largest tm that (a) keeps one A buffer near the target size and
    # (b) keeps all resident pipeline buffers inside the VMEM budget.
    per_row = 2 * row_bytes                   # A tile, double-buffered
    per_row += 2 * _LANE * 4                  # (tm, 1) output tile (lane-padded), x2
    if k_tiles > 1:
        per_row += _LANE * 4                  # (tm, 128) f32 accumulator
    tm = min(_TARGET_A_BUFFER_BYTES // row_bytes, budget // per_row)
    tm = max(_SUBLANE, _round_down(tm, _SUBLANE))

    # M handling (no padding of A anywhere).
    if tm >= M:
        if M >= 2 * _SUBLANE:
            # >= 2 row tiles so v7x megacore has work on both TensorCores.
            tm = _round_up(_cdiv(M, 2), _SUBLANE)
        else:
            tm = M                            # tiny M: full-dim block is legal
    else:
        m_tiles = _cdiv(M, tm)
        if m_tiles % 2 == 1:
            # Prefer an even tile count (megacore balance); halve tm if that
            # actually yields an even count.
            tm_half = _round_down(max(_SUBLANE, tm // 2), _SUBLANE)
            if _SUBLANE <= tm_half < tm and _cdiv(M, tm_half) % 2 == 0:
                tm = tm_half

    # Row-chunk size for the single-K kernel (bounds f32 temporaries ~1 MiB).
    rm = _round_down(_ROW_CHUNK_BYTES // (lane_n * 4), _SUBLANE)
    rm = min(max(rm, _SUBLANE), tm)
    return tm, tk, k_tiles, rm


def _vmem_limit_bytes(tm, tk_lanes, itemsize, k_tiles, x_rows, x_cols, budget):
    a_buf = tm * tk_lanes * itemsize
    o_buf = _round_up(tm, _SUBLANE) * _LANE * 4
    x_buf = _round_up(x_rows, _SUBLANE) * _round_up(x_cols, _LANE) * 4
    acc = tm * _LANE * 4 if k_tiles > 1 else 0
    need = 2 * a_buf + 2 * o_buf + 2 * x_buf + acc
    limit = int(need * 1.4) + (8 << 20)       # headroom for internal scratch
    return int(max(32 << 20, min(limit, budget)))


def _make_single_block_kernel(tm, rm):
    """Single K block per row tile: o = sum(A_tile * x, axis=-1)."""
    row_offsets = tuple(range(0, tm, rm))

    def kernel(a_ref, x_ref, o_ref):
        xv = x_ref[...].astype(jnp.float32)                     # (1, N)
        for r0 in row_offsets:                                   # static unroll
            rows = min(rm, tm - r0)
            a_c = a_ref[r0:r0 + rows, :].astype(jnp.float32)     # (rows, N)
            # one cross-lane (XLU) reduce per output row-chunk
            o_ref[r0:r0 + rows, :] = jnp.sum(
                a_c * xv, axis=-1, keepdims=True).astype(o_ref.dtype)

    return kernel


def _make_tiled_k_kernel(tm, tk, n_valid, need_mask, x_resident):
    """K tiled across the grid: lane-dense (tm, 128) accumulator, pure-VALU
    partial sums every step, single cross-lane reduce on the last K step.
    The ragged last K tile is masked in-kernel (A is never padded)."""
    n_chunks = tk // _LANE

    def kernel(a_ref, x_ref, o_ref, acc_ref):
        k = pl.program_id(1)

        @pl.when(k == 0)
        def _():
            acc_ref[...] = jnp.zeros_like(acc_ref)

        if x_resident:
            # x lives resident as (k_tiles, tk); pick this step's row.
            xv = x_ref[pl.ds(k, 1), :].astype(jnp.float32)       # (1, tk)
        else:
            xv = x_ref[...].astype(jnp.float32)                  # (1, tk)

        def accumulate(mask_cols):
            if mask_cols:
                lane_iota = jax.lax.broadcasted_iota(
                    jnp.int32, (tm, _LANE), 1)
            part = jnp.zeros((tm, _LANE), jnp.float32)
            for j in range(n_chunks):                            # static unroll
                lo = j * _LANE
                a_c = a_ref[:, lo:lo + _LANE].astype(jnp.float32)
                if mask_cols:
                    cols = k * tk + lo + lane_iota
                    a_c = jnp.where(cols < n_valid, a_c, 0.0)
                part = part + a_c * xv[:, lo:lo + _LANE]
            acc_ref[...] += part

        if need_mask:
            last = pl.num_programs(1) - 1

            @pl.when(k != last)
            def _():
                accumulate(False)

            @pl.when(k == last)
            def _():
                accumulate(True)
        else:
            accumulate(False)

        @pl.when(k == pl.num_programs(1) - 1)
        def _():
            # single cross-lane (XLU) reduce per output tile
            o_ref[...] = jnp.sum(acc_ref[...], axis=-1,
                                 keepdims=True).astype(o_ref.dtype)

    return kernel


def deepcs_forward(A: jax.Array, x: jax.Array) -> jax.Array:
    """Compute b = A @ x with a Pallas TPU kernel.

    A: (M, N), x: (N, 1) parameter.  Returns b: (M, 1).  A is streamed
    unpadded; only the tiny x vector is zero-padded (when K is tiled).
    """
    M, N = A.shape
    assert x.shape == (N, 1), f"expected x of shape ({N}, 1), got {x.shape}"

    itemsize = jnp.dtype(A.dtype).itemsize
    out_dtype = jnp.result_type(A.dtype, x.dtype)
    budget = _vmem_budget_bytes()
    tm, tk, k_tiles, rm = _choose_tiles(M, N, itemsize, budget)
    m_tiles = _cdiv(M, tm)

    x_row = x.reshape(1, N)

    if k_tiles == 1:
        kernel = _make_single_block_kernel(tm, rm)
        grid = (m_tiles,)
        in_specs = [
            pl.BlockSpec((tm, N), lambda i: (i, 0)),     # i-th row tile of A
            pl.BlockSpec((1, N), lambda i: (0, 0)),      # x resident (1 DMA)
        ]
        out_specs = pl.BlockSpec((tm, 1), lambda i: (i, 0))
        scratch = []
        dims = ("parallel",)
        x_arg = x_row
        x_rows, x_cols = 1, N
    else:
        n_ceil = k_tiles * tk
        if n_ceil > N:                                   # tiny pad of x only
            x_row = jnp.pad(x_row, ((0, 0), (0, n_ceil - N)))
        # Keep x resident across the K loop when its VMEM footprint is small:
        # put K tiles on the sublane axis so the per-step slice is cheap.
        x_resident = _round_up(k_tiles, _SUBLANE) * tk * 4 * 2 <= (4 << 20)
        if x_resident:
            x_arg = x_row.reshape(k_tiles, tk)
            x_spec = pl.BlockSpec((k_tiles, tk), lambda i, k: (0, 0))
            x_rows, x_cols = k_tiles, tk
        else:
            x_arg = x_row
            x_spec = pl.BlockSpec((1, tk), lambda i, k: (0, k))
            x_rows, x_cols = 1, tk
        kernel = _make_tiled_k_kernel(tm, tk, N, N % tk != 0, x_resident)
        grid = (m_tiles, k_tiles)
        in_specs = [
            pl.BlockSpec((tm, tk), lambda i, k: (i, k)),
            x_spec,
        ]
        out_specs = pl.BlockSpec((tm, 1), lambda i, k: (i, 0))
        scratch = [pltpu.VMEM((tm, _LANE), jnp.float32)]
        dims = ("parallel", "arbitrary")

    vmem_limit = _vmem_limit_bytes(tm, _round_up(tk, _LANE), itemsize,
                                   k_tiles, x_rows, x_cols, budget)

    cost = pl.CostEstimate(
        flops=2 * M * N,
        transcendentals=0,
        bytes_accessed=int(itemsize * M * N
                           + x_arg.size * jnp.dtype(x.dtype).itemsize
                           + M * jnp.dtype(out_dtype).itemsize),
    )

    grid_spec = pltpu.PrefetchScalarGridSpec(
        num_scalar_prefetch=0,
        grid=grid,
        in_specs=in_specs,
        out_specs=out_specs,
        scratch_shapes=scratch,
    )

    return pl.pallas_call(
        kernel,
        out_shape=jax.ShapeDtypeStruct((M, 1), out_dtype),
        grid_spec=grid_spec,
        compiler_params=pltpu.CompilerParams(
            dimension_semantics=dims,
            vmem_limit_bytes=vmem_limit,
        ),
        cost_estimate=cost,
    )(A, x_arg)


if __name__ == "__main__":
    key = jax.random.PRNGKey(0)

    # Small shapes consistent with the module: A is (M, N), param x is (N, 1).
    M, N = 16, 32
    x_param = jnp.full((N, 1), 0.5, dtype=jnp.float32)   # torch.ones(N,1)*0.5
    A = jax.random.normal(key, (M, N), dtype=jnp.float32)

    b = jax.block_until_ready(deepcs_forward(A, x_param))
    assert b.shape == (M, 1)
    assert jnp.allclose(b, A @ x_param, atol=1e-5, rtol=1e-5)

    # Also exercise the tiled-K path with ragged M and ragged K (no padding
    # of A anywhere; last K tile masked in-kernel).
    M2, N2 = 40, 4500
    A2 = jax.random.normal(jax.random.PRNGKey(1), (M2, N2), dtype=jnp.float32)
    x2 = jnp.full((N2, 1), 0.5, dtype=jnp.float32)
    b2 = jax.block_until_ready(deepcs_forward(A2, x2))
    ref2 = jnp.sum(A2 * x2.reshape(1, -1), axis=1, keepdims=True)
    assert b2.shape == (M2, 1)
    assert jnp.allclose(b2, ref2, atol=1e-3, rtol=1e-4)

    print("KERNEL_OK")
</pallas_src>

<mosaic_0001>
module attributes {stable_mosaic.version = 11 : i64} {
  func.func @kernel(%arg0: i32, %arg1: memref<8x32xf32, #tpu.memory_space<vmem>>, %arg2: memref<1x32xf32, #tpu.memory_space<vmem>>, %arg3: memref<8x1xf32, #tpu.memory_space<vmem>>) attributes {dimension_semantics = [#tpu.dimension_semantics<parallel>], iteration_bounds = array<i64: 2>, scalar_prefetch = 0 : i64, scratch_operands = 0 : i64, tpu.core_type = #tpu.core_type<tc>, window_params = [{transform_indices = @transform_0, window_bounds = array<i64: 8, 32>}, {pipeline_mode = #tpu.pipeline_mode<synchronous>, transform_indices = @transform_1, window_bounds = array<i64: 1, 32>}, {transform_indices = @transform_2, window_bounds = array<i64: 8, 1>}]} {
    %c0 = arith.constant 0 : index
    %c0_0 = arith.constant 0 : index
    %0 = vector.load %arg2[%c0, %c0_0] : memref<1x32xf32, #tpu.memory_space<vmem>>, vector<1x32xf32>
    %c0_1 = arith.constant 0 : index
    %c0_2 = arith.constant 0 : index
    %1 = vector.load %arg1[%c0_1, %c0_2] : memref<8x32xf32, #tpu.memory_space<vmem>>, vector<8x32xf32>
    %2 = vector.broadcast %0 : vector<1x32xf32> to vector<8x32xf32>
    %3 = arith.mulf %1, %2 : vector<8x32xf32>
    %cst = arith.constant dense<0.000000e+00> : vector<8xf32>
    %4 = vector.multi_reduction <add>, %3, %cst [1] : vector<8x32xf32> to vector<8xf32>
    %5 = vector.shape_cast %4 : vector<8xf32> to vector<8x1xf32>
    %c0_3 = arith.constant 0 : index
    %c0_4 = arith.constant 0 : index
    %6 = vector.load %arg3[%c0_3, %c0_4] : memref<8x1xf32, #tpu.memory_space<vmem>>, vector<8x1xf32>
    tpu.vector_store %arg3[%c0_3, %c0_4], %5 {strides = array<i32>} : memref<8x1xf32, #tpu.memory_space<vmem>>, vector<8x1xf32>,
    return
  }
  func.func @transform_0(%arg0: i32) -> (i32, i32) {
    %c0_i32 = arith.constant 0 : i32
    %c0_i32_0 = arith.constant 0 : i32
    return %arg0, %c0_i32 : i32, i32
  }
  func.func @transform_1(%arg0: i32) -> (i32, i32) {
    %c0_i32 = arith.constant 0 : i32
    %c0_i32_0 = arith.constant 0 : i32
    %c0_i32_1 = arith.constant 0 : i32
    return %c0_i32, %c0_i32_0 : i32, i32
  }
  func.func @transform_2(%arg0: i32) -> (i32, i32) {
    %c0_i32 = arith.constant 0 : i32
    %c0_i32_0 = arith.constant 0 : i32
    return %arg0, %c0_i32 : i32, i32
  }
}

</mosaic_0001>

<llo_original>
// kernel: tpu_custom_call.1
$region0: #{tpu_custom_call.1}
  #allocation0 [shape = 'u32[]', space=smem, size = 0x4, offset = 0x4, fixed_abs, tag = 'smem constant byte address 0x4 - core index']
  #allocation1 [shape = 'u32[72,128]{1,0:T(1,128)}', space=vmem, size = 0x9000, scoped, tag = 'internal scratch']
  %s0 = inlined_call_operand.hbm [shape: f32[16,32], index: 0, kind: input, shape index: {}]
  %s1 = inlined_call_operand.hbm [shape: f32[1,32], index: 1, kind: input, shape index: {}]
  %s2 = inlined_call_operand.vmem [shape: f32[16,1], index: 2, kind: output, shape index: {}]
  %s3 = sld [smem:[#allocation0]]
  $region49: #{tpu_custom_call.1} parent=0
    _
  %s5 = ssub.s32 1, %s3
  %s6 = scalar_select 0, %s5, %s3
  $region1: #{tpu_custom_call.1} parent=0
    #allocation2 [shape = 'u8[8192]{0}', space=vmem, size = 0x2000, scoped, tag = 'input window, operand 0']
    #allocation3 [shape = 's32[2]{0}', space=sflag, size = 0x8, scoped, tag = 'scoped memory for tpu_custom_call.1']
    #allocation4 [shape = 'u8[512]{0}', space=vmem, size = 0x400, scoped, tag = 'input window, operand 1, single buffered']
    #allocation5 [shape = 's32[1]{0}', space=sflag, size = 0x4, scoped, tag = 'scoped memory for tpu_custom_call.1']
    %7 = vsyncpa [#allocation3], 0
    %s8 = scalar_lea.sflag [#allocation3], 1
    %9 = vsyncpa %s8, 0
    %10 = vsyncpa [#allocation5], 0
    loop: start=0, step=1, limit=4
    $region2: #{tpu_custom_call.1} parent=1 // loop_pre_header
      _
    $region3: #{tpu_custom_call.1} parent=1 // loop_header
      %s12 = sphi 0, %s16
      %p13 = scmp.ge.s32.totalorder %s12, 4
      %s22 = sphi 0, %s24
      %s25 = sphi 0, %s22
      %s26 = sphi 0, %s25
      %s42 = sphi 0, %s26
      %s46 = sphi 0, %s46
      %s48 = sphi 0, %s46
      %s49 = sphi 0, %s48
      %s63 = sphi 0, %s49
      %s69 = sphi 0, %s71
      %s72 = sphi 0, %s69
      %s73 = sphi 0, %s72
      %s89 = sphi 0, %s73
    $region4: #{tpu_custom_call.1} parent=1 // loop_header_branch
      %15 = sbr.rel (%p13) target = $region8
    $region5: #{tpu_custom_call.1} parent=1 // loop_body
      %s17 = ssub.s32 %s12, 1
      %s18 = ssub.s32 %s12, 2
      %s19 = sadd.s32 %s12, 1
      %s20 = ssub.s32 %s12, %s19
      %p21 = scmp.eq.s32.totalorder %s20, 0
      %s23 = sadd.s32 %s22, 1
      %s24 = scalar_select %p21, %s22, %s23
      %p27 = pneg %p21
      %p28 = scmp.eq.s32.totalorder %s12, 1
      %p29 = por %p27, %p28
      %p30 = scmp.ne.s32.totalorder %s22, %s25
      %p31 = scmp.eq.s32.totalorder %s12, 0
      %p32 = por %p30, %p31
      %p33 = scmp.ne.s32.totalorder %s22, %s25
      %p34 = scmp.eq.s32.totalorder %s17, 1
      %p35 = por %p33, %p34
      %p36 = scmp.ne.s32.totalorder %s25, %s26
      %p37 = scmp.eq.s32.totalorder %s17, 0
      %p38 = por %p36, %p37
      %p39 = scmp.ne.s32.totalorder %s25, %s26
      %p40 = scmp.eq.s32.totalorder %s18, 1
      %p41 = por %p39, %p40
      %p43 = scmp.ne.s32.totalorder %s26, %s42
      %p44 = scmp.eq.s32.totalorder %s18, 0
      %p45 = por %p43, %p44
      %s47 = sadd.s32 %s46, 1
      %p50 = scmp.eq.s32.totalorder %s12, 1
      %p51 = scmp.ne.s32.totalorder %s46, %s48
      %p52 = scmp.eq.s32.totalorder %s12, 0
      %p53 = por %p51, %p52
      %p54 = scmp.ne.s32.totalorder %s46, %s48
      %p55 = scmp.eq.s32.totalorder %s17, 1
      %p56 = por %p54, %p55
      %p57 = scmp.ne.s32.totalorder %s48, %s49
      %p58 = scmp.eq.s32.totalorder %s17, 0
      %p59 = por %p57, %p58
      %p60 = scmp.ne.s32.totalorder %s48, %s49
      %p61 = scmp.eq.s32.totalorder %s18, 1
      %p62 = por %p60, %p61
      %p64 = scmp.ne.s32.totalorder %s49, %s63
      %p65 = scmp.eq.s32.totalorder %s18, 0
      %p66 = por %p64, %p65
      %s67 = ssub.s32 %s12, %s19
      %p68 = scmp.eq.s32.totalorder %s67, 0
      %s70 = sadd.s32 %s69, 1
      %s71 = scalar_select %p68, %s69, %s70
      %p74 = pneg %p68
      %p75 = scmp.eq.s32.totalorder %s12, 1
      %p76 = por %p74, %p75
      %p77 = scmp.ne.s32.totalorder %s69, %s72
      %p78 = scmp.eq.s32.totalorder %s12, 0
      %p79 = por %p77, %p78
      %p80 = scmp.ne.s32.totalorder %s69, %s72
      %p81 = scmp.eq.s32.totalorder %s17, 1
      %p82 = por %p80, %p81
      %p83 = scmp.ne.s32.totalorder %s72, %s73
      %p84 = scmp.eq.s32.totalorder %s17, 0
      %p85 = por %p83, %p84
      %p86 = scmp.ne.s32.totalorder %s72, %s73
      %p87 = scmp.eq.s32.totalorder %s18, 1
      %p88 = por %p86, %p87
      %p90 = scmp.ne.s32.totalorder %s73, %s89
      %p91 = scmp.eq.s32.totalorder %s18, 0
      %p92 = por %p90, %p91
      %p93 = scmp.le.s32.totalorder 1, %s12
      %p94 = scmp.lt.s32.totalorder %s12, 3
      %p95 = pnand %p93, %p94
      %p96 = pneg %p95
      // Predicated region
      $region9: #{tpu_custom_call.1} parent=5 // pred_check
        _
      $region10: #{tpu_custom_call.1} parent=5 // pred_check_branch
        %98 = sbr.rel (%p95) target = $region12
      $region11: #{tpu_custom_call.1} parent=5 // pred_region
        %s99 = ssub.s32 %s12, 1
        // Predicated region
        $region13: #{tpu_custom_call.1} parent=11 // pred_check
          %p100 = pneg %p59
        $region14: #{tpu_custom_call.1} parent=11 // pred_check_branch
          %102 = sbr.rel (%p100) target = $region16
        $region15: #{tpu_custom_call.1} parent=11 // pred_region
          %104 = vsyncadd [#allocation5], 0
          %s106 = sshll.u32 %s1, 4
          %s107 = int_to_ptr.hbm [resolvable:$true] %s106
          %s108 = sshll.u32 [#allocation4], 4
          %s109 = int_to_ptr.vmem [resolvable:$true] %s108
          %111 = dma.hbm_to_vmem [thread:$0]  %s107, 16, %s109, [#allocation5]
        $region16: #{tpu_custom_call.1} parent=11 // pred_fallthru
          _
      $region12: #{tpu_custom_call.1} parent=5 // pred_fallthru
        _
      %p112 = scmp.lt.s32.totalorder %s12, 2
      // Predicated region
      $region17: #{tpu_custom_call.1} parent=5 // pred_check
        %p113 = pneg %p112
      $region18: #{tpu_custom_call.1} parent=5 // pred_check_branch
        %115 = sbr.rel (%p113) target = $region20
      $region19: #{tpu_custom_call.1} parent=5 // pred_region
        // Predicated region
        $region21: #{tpu_custom_call.1} parent=19 // pred_check
          %p116 = pneg %p32
        $region22: #{tpu_custom_call.1} parent=19 // pred_check_branch
          %118 = sbr.rel (%p116) target = $region24
        $region23: #{tpu_custom_call.1} parent=19 // pred_region
          %s119 = sand.u32 %s22, 1
          %s120 = scalar_lea.sflag [#allocation3], %s119
          %s121 = sand.u32 %s22, 1
          %s122 = smul.addr %s121, 8
          %s123 = scalar_lea.vmem [#allocation2], %s122
          %125 = vsyncadd %s120, 0
          %s126 = smul.addr %s12, 8
          %s127 = scalar_lea.hbm %s0, %s126
          %s129 = sshll.u32 %s127, 4
          %s130 = int_to_ptr.hbm [resolvable:$true] %s129
          %s131 = sshll.u32 %s123, 4
          %s132 = int_to_ptr.vmem [resolvable:$true] %s131
          %134 = dma.hbm_to_vmem [thread:$0]  %s130, 128, %s132, %s120
        $region24: #{tpu_custom_call.1} parent=19 // pred_fallthru
          _
      $region20: #{tpu_custom_call.1} parent=5 // pred_fallthru
        _
      %p135 = scmp.le.s32.totalorder 1, %s12
      %p136 = scmp.lt.s32.totalorder %s12, 3
      %p137 = pnand %p135, %p136
      %p138 = pneg %p137
      // Predicated region
      $region25: #{tpu_custom_call.1} parent=5 // pred_check
        _
      $region26: #{tpu_custom_call.1} parent=5 // pred_check_branch
        %140 = sbr.rel (%p137) target = $region28
      $region27: #{tpu_custom_call.1} parent=5 // pred_region
        %s141 = ssub.s32 %s12, 1
        %s142 = sand.u32 %s25, 1
        %s143 = scalar_lea.sflag [#allocation3], %s142
        %s144 = sand.u32 %s25, 1
        %s145 = smul.addr %s144, 8
        %s146 = scalar_lea.vmem [#allocation2], %s145
        // Predicated region
        $region29: #{tpu_custom_call.1} parent=27 // pred_check
          %p147 = pneg %p38
        $region30: #{tpu_custom_call.1} parent=27 // pred_check_branch
          %149 = sbr.rel (%p147) target = $region32
        $region31: #{tpu_custom_call.1} parent=27 // pred_region
          %151 = dma.done %s143, 128
        $region32: #{tpu_custom_call.1} parent=27 // pred_fallthru
          _
        // Predicated region
        $region33: #{tpu_custom_call.1} parent=27 // pred_check
          %p152 = pneg %p59
        $region34: #{tpu_custom_call.1} parent=27 // pred_check_branch
          %154 = sbr.rel (%p152) target = $region36
        $region35: #{tpu_custom_call.1} parent=27 // pred_region
          %156 = dma.done [#allocation5], 16
        $region36: #{tpu_custom_call.1} parent=27 // pred_fallthru
          _
        %s157 = sand.u32 %s25, 1
        %s158 = scalar_lea.sflag [#allocation3], %s157
        %s159 = sand.u32 %s25, 1
        %s160 = smul.addr %s159, 8
        %s161 = scalar_lea.vmem [#allocation2], %s160
        %p162 = pneg %p38
        %p163 = pneg %p35
        %p164 = pneg %p59
        %p165 = pneg %p56
        %p166 = pneg %p85
        %p167 = pneg %p82
        %p168 = scmp.lt.s32.totalorder %s17, 1
        %s169 = scalar_select %p168, %s17, 1
        %s170 = smul.addr %s169, 8
        %s171 = scalar_lea.vmem %s2, %s170
        %p172 = scmp.lt.s32.totalorder %s17, 1
        %s173 = scalar_select %p172, %s17, 1
        %s174 = smul.addr %s173, 8
        %s175 = scalar_lea.vmem %s2, %s174
        %v176 = vld [vmem:[#allocation4] sm:$0x1]
        %v177 = vld [vmem:[%s146] sm:$0xff]
        %v179 = vperm.slane %v176, 0
        %v181 = vmul.f32 %v177, %v179
        %vm182 = vcmask 261120
        %v183 = vsel %vm182, %v181, 0.0
        %184 = vadd.xlane.f32.xlu0 %v183
        %v185 = vpop.xlane.xlu0 %184
        %vm186 = vcmask 7168
        %187 = vst.msk [vmem:[%s175] sm:$0xff] %vm186, %v185
        %p188 = scmp.lt.s32.totalorder %s17, 1
        %s189 = scalar_select %p188, %s17, 1
        %s190 = smul.addr %s189, 8
        %s191 = scalar_lea.vmem %s2, %s190
        // Predicated region
        $region37: #{tpu_custom_call.1} parent=27 // pred_check
          %p192 = pneg %p82
        $region38: #{tpu_custom_call.1} parent=27 // pred_check_branch
          %194 = sbr.rel (%p192) target = $region40
        $region39: #{tpu_custom_call.1} parent=27 // pred_region
          _
        $region40: #{tpu_custom_call.1} parent=27 // pred_fallthru
          _
      $region28: #{tpu_custom_call.1} parent=5 // pred_fallthru
        _
      %p195 = scmp.le.s32.totalorder 2, %s12
      // Predicated region
      $region41: #{tpu_custom_call.1} parent=5 // pred_check
        %p196 = pneg %p195
      $region42: #{tpu_custom_call.1} parent=5 // pred_check_branch
        %198 = sbr.rel (%p196) target = $region44
      $region43: #{tpu_custom_call.1} parent=5 // pred_region
        %s199 = ssub.s32 %s12, 2
        // Predicated region
        $region45: #{tpu_custom_call.1} parent=43 // pred_check
          %p200 = pneg %p88
        $region46: #{tpu_custom_call.1} parent=43 // pred_check_branch
          %202 = sbr.rel (%p200) target = $region48
        $region47: #{tpu_custom_call.1} parent=43 // pred_region
          %p203 = scmp.lt.s32.totalorder %s18, 1
          %s204 = scalar_select %p203, %s18, 1
          %s205 = smul.addr %s204, 8
          %s206 = scalar_lea.vmem %s2, %s205
        $region48: #{tpu_custom_call.1} parent=43 // pred_fallthru
          _
      $region44: #{tpu_custom_call.1} parent=5 // pred_fallthru
        _
    $region6: #{tpu_custom_call.1} parent=1 // loop_footer
      %s16 = sadd.s32 1, %s12
    $region7: #{tpu_custom_call.1} parent=1 // loop_footer_branch
      %11 = sbr.rel target = $region3
    $region8: #{tpu_custom_call.1} parent=1 // loop_exit
      _
    %207 = vsyncpa [#allocation3], 1
    %s208 = scalar_lea.sflag [#allocation3], 1
    %209 = vsyncpa %s208, 1
    %210 = vsyncpa [#allocation5], 1

</llo_original>
